<compile_context>
chip_gen: v7x
topology: tpu7x:2x2x1
jax: 0.10.0
libtpu: 0.0.40
codegen_flags: <defaults>
</compile_context>

<pallas_src>
import functools

import jax
import jax.numpy as jnp
from jax.experimental import pallas as pl
from jax.experimental.pallas import tpu as pltpu

LANES = 128
SUBLANES = 8
MAX_TILE_ROWS = 8192          # (8192,128): f32+f32+bool ~= 9 MiB per buffer set
VMEM_LIMIT_BYTES = 40 << 20   # room for 2x double-buffered 9 MiB sets; < v7x 64 MiB


def _num_tensorcores_per_chip() -> int:
    """Best-effort detection of 2-TC chips (v7x); default to 1 TC."""
    try:
        kind = jax.devices()[0].device_kind.lower()
    except Exception:  # pragma: no cover - defensive
        return 1
    return 2 if ("v7" in kind or "7x" in kind) else 1


def _masked_mae_kernel(pred_ref, true_ref, mask_ref, sum_ref, cnt_ref,
                       *, tile_rows, blocks_per_chunk, num_blocks, tail_rows):
    c = pl.program_id(0)   # chunk (TensorCore split on 2-TC chips; size 1 otherwise)
    i = pl.program_id(1)   # row-block within the chunk (reduction axis)

    # Output blocks are resident across the "arbitrary" axis -> use them as
    # the accumulators; init on the first step of each chunk.
    @pl.when(i == 0)
    def _():
        sum_ref[...] = jnp.zeros_like(sum_ref)
        cnt_ref[...] = jnp.zeros_like(cnt_ref)

    def fold(x):
        # (tile_rows,128) -> (tile_rows//8, 8, 128) splits the sublane axis
        # only (each (8,128) sub-block is exactly one vreg tile), so the
        # axis-0 sum is a pure VPU vreg add tree with no relayout.
        return x.reshape(tile_rows // SUBLANES, SUBLANES, LANES).sum(axis=0)

    def accumulate(valid):
        p = pred_ref[...].astype(jnp.float32)
        t = true_ref[...].astype(jnp.float32)
        # Select (not multiply): masked-out lanes may hold tail garbage or
        # user NaN/inf; jnp.where keeps them out, exactly like masked_select.
        diff = jnp.where(valid, jnp.abs(p - t), 0.0)
        sum_ref[0, :, :] = sum_ref[0, :, :] + fold(diff)
        cnt_ref[0, :, :] = cnt_ref[0, :, :] + fold(valid.astype(jnp.float32))

    if tail_rows == 0:
        # Every block is fully in range: no iota/validity work emitted at all.
        accumulate(mask_ref[...])
    else:
        blk = c * blocks_per_chunk + i

        @pl.when(blk < num_blocks - 1)
        def _():
            accumulate(mask_ref[...])

        @pl.when(blk == num_blocks - 1)
        def _():
            # Only the (single) partial tail block pays for the row-index mask.
            rid = jax.lax.broadcasted_iota(jnp.int32, (tile_rows, LANES), 0)
            accumulate(jnp.logical_and(mask_ref[...], rid < tail_rows))


def masked_mae_loss(y_pred: jax.Array, y_true: jax.Array, mask: jax.Array) -> jax.Array:
    """Equivalent of MaskedMAELoss(reduction='mean')(y_pred, y_true, mask)."""
    assert y_pred.shape == y_true.shape == mask.shape
    n = y_pred.size
    assert n > 0

    pred_f = y_pred.reshape(-1)
    true_f = y_true.reshape(-1)
    mask_f = mask.reshape(-1).astype(jnp.bool_)

    # Lane-dense (rows, 128) slab with rows a multiple of 8.  Pad ONLY if
    # needed (< 1024 elements of pad; padded mask entries are 0).
    pad = (-n) % (SUBLANES * LANES)
    if pad:
        pred_f = jnp.pad(pred_f, (0, pad))
        true_f = jnp.pad(true_f, (0, pad))
        mask_f = jnp.pad(mask_f, (0, pad))
    rows = (n + pad) // LANES

    pred2 = pred_f.reshape(rows, LANES)
    true2 = true_f.reshape(rows, LANES)
    mask2 = mask_f.reshape(rows, LANES)

    tile_rows = min(MAX_TILE_ROWS, rows)          # multiple of 8 by construction
    num_blocks = -(-rows // tile_rows)
    tail = rows - (num_blocks - 1) * tile_rows
    tail_rows = 0 if tail == tile_rows else tail  # 0 => no partial tail block

    # 2-chunk core split only on 2-TC chips and only when it divides exactly
    # (so there is never a clamped / duplicated tile DMA and both cores get
    # the same number of blocks).
    nc = 2 if (_num_tensorcores_per_chip() >= 2
               and num_blocks >= 2 and num_blocks % 2 == 0) else 1
    bpc = num_blocks // nc

    in_spec = pl.BlockSpec((tile_rows, LANES), lambda c, i: (c * bpc + i, 0))
    out_spec = pl.BlockSpec((1, SUBLANES, LANES), lambda c, i: (c, 0, 0))

    kernel = functools.partial(
        _masked_mae_kernel, tile_rows=tile_rows, blocks_per_chunk=bpc,
        num_blocks=num_blocks, tail_rows=tail_rows)

    total = rows * LANES
    cost = pl.CostEstimate(
        flops=3 * total,                       # sub, abs, add per element
        transcendentals=0,
        bytes_accessed=total * (4 + 4 + 1) + 2 * nc * SUBLANES * LANES * 4,
    )

    psum, pcnt = pl.pallas_call(
        kernel,
        out_shape=(
            jax.ShapeDtypeStruct((nc, SUBLANES, LANES), jnp.float32),
            jax.ShapeDtypeStruct((nc, SUBLANES, LANES), jnp.float32),
        ),
        grid_spec=pltpu.PrefetchScalarGridSpec(
            num_scalar_prefetch=0,
            grid=(nc, bpc),
            in_specs=[in_spec, in_spec, in_spec],
            out_specs=[out_spec, out_spec],
        ),
        compiler_params=pltpu.CompilerParams(
            dimension_semantics=("parallel", "arbitrary"),
            vmem_limit_bytes=VMEM_LIMIT_BYTES,
        ),
        cost_estimate=cost,
    )(pred2, true2, mask2)

    # masked mean: sum(|err| * mask) / sum(mask)   (tiny partials -> scalar)
    return jnp.sum(psum) / jnp.sum(pcnt)


if __name__ == "__main__":
    key = jax.random.PRNGKey(0)
    k1, k2, k3 = jax.random.split(key, 3)

    # Small NCHW-style shapes: batch=2, channels=4, spatial=16x16
    shape = (2, 4, 16, 16)
    y_pred = jax.random.normal(k1, shape, dtype=jnp.float32)
    y_true = jax.random.normal(k2, shape, dtype=jnp.float32)
    mask = jax.random.bernoulli(k3, p=0.5, shape=shape)

    loss = masked_mae_loss(y_pred, y_true, mask)
    loss = jax.block_until_ready(loss)

    # reference check (pure JAX)
    m = mask.astype(jnp.float32)
    ref = jnp.sum(jnp.abs(y_pred - y_true) * m) / jnp.sum(m)
    assert jnp.allclose(loss, ref, rtol=1e-5, atol=1e-5), (loss, ref)

    print("KERNEL_OK")
</pallas_src>

<mosaic_0001>
module attributes {stable_mosaic.version = 11 : i64} {
  func.func @_masked_mae_kernel(%arg0: i32, %arg1: i32, %arg2: memref<16x128xf32, #tpu.memory_space<vmem>>, %arg3: memref<16x128xf32, #tpu.memory_space<vmem>>, %arg4: memref<16x128xi32, #tpu.memory_space<vmem>>, %arg5: memref<1x8x128xf32, #tpu.memory_space<vmem>>, %arg6: memref<1x8x128xf32, #tpu.memory_space<vmem>>) attributes {dimension_semantics = [#tpu.dimension_semantics<parallel>, #tpu.dimension_semantics<arbitrary>], iteration_bounds = array<i64: 1, 1>, scalar_prefetch = 0 : i64, scratch_operands = 0 : i64, tpu.core_type = #tpu.core_type<tc>, window_params = [{transform_indices = @transform_0, window_bounds = array<i64: 16, 128>}, {transform_indices = @transform_1, window_bounds = array<i64: 16, 128>}, {transform_indices = @transform_2, window_bounds = array<i64: 16, 128>}, {transform_indices = @transform_3, window_bounds = array<i64: 1, 8, 128>}, {transform_indices = @transform_4, window_bounds = array<i64: 1, 8, 128>}]} {
    %c0_i32 = arith.constant 0 : i32
    %0 = arith.cmpi eq, %arg1, %c0_i32 : i32
    %1 = arith.extui %0 : i1 to i32
    %c0_i32_0 = arith.constant 0 : i32
    %2 = arith.cmpi ne, %1, %c0_i32_0 : i32
    scf.if %2 {
      %cst_21 = arith.constant 0.000000e+00 : f32
      %29 = vector.broadcast %cst_21 : f32 to vector<1x8x128xf32>
      %c0_22 = arith.constant 0 : index
      %c0_23 = arith.constant 0 : index
      %c0_24 = arith.constant 0 : index
      %30 = vector.load %arg5[%c0_22, %c0_23, %c0_24] : memref<1x8x128xf32, #tpu.memory_space<vmem>>, vector<1x8x128xf32>
      tpu.vector_store %arg5[%c0_22, %c0_23, %c0_24], %29 {strides = array<i32>} : memref<1x8x128xf32, #tpu.memory_space<vmem>>, vector<1x8x128xf32>,
      %cst_25 = arith.constant 0.000000e+00 : f32
      %31 = vector.broadcast %cst_25 : f32 to vector<1x8x128xf32>
      %c0_26 = arith.constant 0 : index
      %c0_27 = arith.constant 0 : index
      %c0_28 = arith.constant 0 : index
      %32 = vector.load %arg6[%c0_26, %c0_27, %c0_28] : memref<1x8x128xf32, #tpu.memory_space<vmem>>, vector<1x8x128xf32>
      tpu.vector_store %arg6[%c0_26, %c0_27, %c0_28], %31 {strides = array<i32>} : memref<1x8x128xf32, #tpu.memory_space<vmem>>, vector<1x8x128xf32>,
    } else {
    }
    %c0 = arith.constant 0 : index
    %c0_1 = arith.constant 0 : index
    %3 = vector.load %arg4[%c0, %c0_1] : memref<16x128xi32, #tpu.memory_space<vmem>>, vector<16x128xi32>
    %cst = arith.constant dense<0> : vector<16x128xi32>
    %4 = arith.cmpi ne, %3, %cst : vector<16x128xi32>
    %c0_2 = arith.constant 0 : index
    %c0_3 = arith.constant 0 : index
    %5 = vector.load %arg2[%c0_2, %c0_3] : memref<16x128xf32, #tpu.memory_space<vmem>>, vector<16x128xf32>
    %c0_4 = arith.constant 0 : index
    %c0_5 = arith.constant 0 : index
    %6 = vector.load %arg3[%c0_4, %c0_5] : memref<16x128xf32, #tpu.memory_space<vmem>>, vector<16x128xf32>
    %7 = arith.subf %5, %6 : vector<16x128xf32>
    %8 = math.absf %7 : vector<16x128xf32>
    %cst_6 = arith.constant 0.000000e+00 : f32
    %9 = vector.broadcast %cst_6 : f32 to vector<16x128xf32>
    %10 = arith.select %4, %8, %9 : vector<16x128xi1>, vector<16x128xf32>
    %c0_7 = arith.constant 0 : index
    %c0_8 = arith.constant 0 : index
    %c0_9 = arith.constant 0 : index
    %11 = vector.load %arg5[%c0_7, %c0_8, %c0_9] : memref<1x8x128xf32, #tpu.memory_space<vmem>>, vector<1x8x128xf32>
    %12 = vector.shape_cast %11 : vector<1x8x128xf32> to vector<8x128xf32>
    %13 = vector.shape_cast %10 : vector<16x128xf32> to vector<2x8x128xf32>
    %cst_10 = arith.constant dense<0.000000e+00> : vector<8x128xf32>
    %14 = vector.multi_reduction <add>, %13, %cst_10 [0] : vector<2x8x128xf32> to vector<8x128xf32>
    %15 = arith.addf %12, %14 : vector<8x128xf32>
    %c0_11 = arith.constant 0 : index
    %c0_12 = arith.constant 0 : index
    %c0_13 = arith.constant 0 : index
    %16 = vector.load %arg5[%c0_11, %c0_12, %c0_13] : memref<1x8x128xf32, #tpu.memory_space<vmem>>, vector<1x8x128xf32>
    %17 = vector.shape_cast %16 : vector<1x8x128xf32> to vector<8x128xf32>
    %18 = vector.shape_cast %15 : vector<8x128xf32> to vector<1x8x128xf32>
    tpu.vector_store %arg5[%c0_11, %c0_12, %c0_13], %18 {strides = array<i32>} : memref<1x8x128xf32, #tpu.memory_space<vmem>>, vector<1x8x128xf32>,
    %c0_14 = arith.constant 0 : index
    %c0_15 = arith.constant 0 : index
    %c0_16 = arith.constant 0 : index
    %19 = vector.load %arg6[%c0_14, %c0_15, %c0_16] : memref<1x8x128xf32, #tpu.memory_space<vmem>>, vector<1x8x128xf32>
    %20 = vector.shape_cast %19 : vector<1x8x128xf32> to vector<8x128xf32>
    %21 = arith.extui %4 : vector<16x128xi1> to vector<16x128xi32>
    %22 = arith.sitofp %21 : vector<16x128xi32> to vector<16x128xf32>
    %23 = vector.shape_cast %22 : vector<16x128xf32> to vector<2x8x128xf32>
    %cst_17 = arith.constant dense<0.000000e+00> : vector<8x128xf32>
    %24 = vector.multi_reduction <add>, %23, %cst_17 [0] : vector<2x8x128xf32> to vector<8x128xf32>
    %25 = arith.addf %20, %24 : vector<8x128xf32>
    %c0_18 = arith.constant 0 : index
    %c0_19 = arith.constant 0 : index
    %c0_20 = arith.constant 0 : index
    %26 = vector.load %arg6[%c0_18, %c0_19, %c0_20] : memref<1x8x128xf32, #tpu.memory_space<vmem>>, vector<1x8x128xf32>
    %27 = vector.shape_cast %26 : vector<1x8x128xf32> to vector<8x128xf32>
    %28 = vector.shape_cast %25 : vector<8x128xf32> to vector<1x8x128xf32>
    tpu.vector_store %arg6[%c0_18, %c0_19, %c0_20], %28 {strides = array<i32>} : memref<1x8x128xf32, #tpu.memory_space<vmem>>, vector<1x8x128xf32>,
    return
  }
  func.func @transform_0(%arg0: i32, %arg1: i32) -> (i32, i32) {
    %c1_i32 = arith.constant 1 : i32
    %0 = arith.muli %arg0, %c1_i32 : i32
    %1 = arith.addi %0, %arg1 : i32
    %c0_i32 = arith.constant 0 : i32
    %c0_i32_0 = arith.constant 0 : i32
    return %1, %c0_i32 : i32, i32
  }
  func.func @transform_1(%arg0: i32, %arg1: i32) -> (i32, i32) {
    %c1_i32 = arith.constant 1 : i32
    %0 = arith.muli %arg0, %c1_i32 : i32
    %1 = arith.addi %0, %arg1 : i32
    %c0_i32 = arith.constant 0 : i32
    %c0_i32_0 = arith.constant 0 : i32
    return %1, %c0_i32 : i32, i32
  }
  func.func @transform_2(%arg0: i32, %arg1: i32) -> (i32, i32) {
    %c1_i32 = arith.constant 1 : i32
    %0 = arith.muli %arg0, %c1_i32 : i32
    %1 = arith.addi %0, %arg1 : i32
    %c0_i32 = arith.constant 0 : i32
    %c0_i32_0 = arith.constant 0 : i32
    return %1, %c0_i32 : i32, i32
  }
  func.func @transform_3(%arg0: i32, %arg1: i32) -> (i32, i32, i32) {
    %c0_i32 = arith.constant 0 : i32
    %c0_i32_0 = arith.constant 0 : i32
    %c0_i32_1 = arith.constant 0 : i32
    return %arg0, %c0_i32, %c0_i32_0 : i32, i32, i32
  }
  func.func @transform_4(%arg0: i32, %arg1: i32) -> (i32, i32, i32) {
    %c0_i32 = arith.constant 0 : i32
    %c0_i32_0 = arith.constant 0 : i32
    %c0_i32_1 = arith.constant 0 : i32
    return %arg0, %c0_i32, %c0_i32_0 : i32, i32, i32
  }
}

</mosaic_0001>

<llo_original>
// kernel: tpu_custom_call.1
$region0: #{tpu_custom_call.1}
  #allocation0 [shape = 'u32[]', space=smem, size = 0x4, offset = 0x4, fixed_abs, tag = 'smem constant byte address 0x4 - core index']
  #allocation1 [shape = 'u32[144,128]{1,0:T(1,128)}', space=vmem, size = 0x12000, scoped, tag = 'internal scratch']
  %s0 = inlined_call_operand.vmem [shape: f32[16,128], index: 0, kind: input, shape index: {}]
  %s1 = inlined_call_operand.hbm [shape: f32[16,128], index: 1, kind: input, shape index: {}]
  %s2 = inlined_call_operand.vmem [shape: s32[16,128], index: 2, kind: input, shape index: {}]
  %s3 = inlined_call_operand.hbm [shape: f32[1,8,128], index: 3, kind: output, shape index: {0}]
  %s4 = inlined_call_operand.hbm [shape: f32[1,8,128], index: 4, kind: output, shape index: {1}]
  %5 = xla_tuple %s3, %s4
  %s6 = sld [smem:[#allocation0]]
  $region38: #{tpu_custom_call.1} parent=0
    _
  %s8 = ssub.s32 1, %s6
  %s9 = scalar_select 0, %s8, %s6
  $region1: #{tpu_custom_call.1} parent=0
    #allocation2 [shape = 'u8[8192]{0}', space=vmem, size = 0x2000, scoped, tag = 'input window, operand 1, single buffered']
    #allocation3 [shape = 's32[1]{0}', space=sflag, size = 0x4, scoped, tag = 'scoped memory for tpu_custom_call.1']
    #allocation4 [shape = 's32[1]{0}', space=sflag, size = 0x4, scoped, tag = 'scoped memory for tpu_custom_call.1']
    #allocation5 [shape = 'u8[4096]{0}', space=vmem, size = 0x1000, scoped, tag = 'output window, operand 0, single buffered']
    #allocation6 [shape = 'u8[4096]{0}', space=vmem, size = 0x1000, scoped, tag = 'output window, operand 1, single buffered']
    #allocation7 [shape = 's32[1]{0}', space=sflag, size = 0x4, scoped, tag = 'scoped memory for tpu_custom_call.1']
    %10 = vsyncpa [#allocation3], 0
    %11 = vsyncpa [#allocation4], 0
    %12 = vsyncpa [#allocation7], 0
    // Predicated region
    $region2: #{tpu_custom_call.1} parent=1 // pred_check
      _
    $region3: #{tpu_custom_call.1} parent=1 // pred_check_branch
      %14 = sbr.rel (0) target = $region5
    $region4: #{tpu_custom_call.1} parent=1 // pred_region
      %s15 = sadd.s32 0, 0
      %s16 = smul.u32 2, %s15
      %p17 = scmp.lt.s32.totalorder %s16, 1
      %s18 = scalar_select %p17, %s16, 1
      %s19 = smul.addr %s18, 8
      %s20 = scalar_lea.vmem %s0, %s19
      %s21 = sadd.s32 0, 0
      %s22 = smul.u32 2, %s21
    $region5: #{tpu_custom_call.1} parent=1 // pred_fallthru
      _
    // Predicated region
    $region6: #{tpu_custom_call.1} parent=1 // pred_check
      _
    $region7: #{tpu_custom_call.1} parent=1 // pred_check_branch
      %24 = sbr.rel (0) target = $region9
    $region8: #{tpu_custom_call.1} parent=1 // pred_region
      %s25 = sadd.s32 0, 0
      %s26 = smul.u32 2, %s25
      %s28 = ssub.s32 256, 256
      %29 = vsyncadd [#allocation3], %s28
      %s30 = smul.addr %s26, 128
      %s31 = scalar_lea.hbm %s1, %s30
      %s32 = sshll.u32 [#allocation2], 4
      %s33 = int_to_ptr.vmem [resolvable:$true] %s32
      %38 = dma.hbm_to_vmem [thread:$0]  %s31, 256, %s33, [#allocation3], 128, 128, 8
    $region9: #{tpu_custom_call.1} parent=1 // pred_fallthru
      _
    // Predicated region
    $region10: #{tpu_custom_call.1} parent=1 // pred_check
      _
    $region11: #{tpu_custom_call.1} parent=1 // pred_check_branch
      %40 = sbr.rel (0) target = $region13
    $region12: #{tpu_custom_call.1} parent=1 // pred_region
      %s41 = sadd.s32 0, 0
      %s42 = smul.u32 2, %s41
      %p43 = scmp.lt.s32.totalorder %s42, 1
      %s44 = scalar_select %p43, %s42, 1
      %s45 = smul.addr %s44, 8
      %s46 = scalar_lea.vmem %s2, %s45
      %s47 = sadd.s32 0, 0
      %s48 = smul.u32 2, %s47
    $region13: #{tpu_custom_call.1} parent=1 // pred_fallthru
      _
    // Predicated region
    $region14: #{tpu_custom_call.1} parent=1 // pred_check
      _
    $region15: #{tpu_custom_call.1} parent=1 // pred_check_branch
      %50 = sbr.rel (0) target = $region17
    $region16: #{tpu_custom_call.1} parent=1 // pred_region
      %51 = dma.done [#allocation3], 256
    $region17: #{tpu_custom_call.1} parent=1 // pred_fallthru
      _
    %s52 = sadd.s32 0, 0
    %s53 = smul.u32 2, %s52
    %p54 = scmp.lt.s32.totalorder %s53, 1
    %s55 = scalar_select %p54, %s53, 1
    %s56 = smul.addr %s55, 8
    %s57 = scalar_lea.vmem %s0, %s56
    %s58 = sadd.s32 0, 0
    %s59 = smul.u32 2, %s58
    %p60 = scmp.lt.s32.totalorder %s59, 1
    %s61 = scalar_select %p60, %s59, 1
    %s62 = smul.addr %s61, 8
    %s63 = scalar_lea.vmem %s2, %s62
    %s64 = sadd.s32 0, 0
    %s65 = smul.u32 2, %s64
    %p66 = scmp.lt.s32.totalorder %s65, 1
    %s67 = scalar_select %p66, %s65, 1
    %s68 = smul.addr %s67, 8
    %s69 = scalar_lea.vmem %s0, %s68
    %s70 = sadd.s32 0, 0
    %s71 = smul.u32 2, %s70
    %s72 = sadd.s32 0, 0
    %s73 = smul.u32 2, %s72
    %s74 = sadd.s32 0, 0
    %s75 = smul.u32 2, %s74
    %p76 = scmp.lt.s32.totalorder %s75, 1
    %s77 = scalar_select %p76, %s75, 1
    %s78 = smul.addr %s77, 8
    %s79 = scalar_lea.vmem %s2, %s78
    %s80 = sadd.s32 0, 0
    %s81 = smul.u32 2, %s80
    %p82 = scmp.eq.s32.totalorder 0, 0
    // Predicated region
    $region18: #{tpu_custom_call.1} parent=1 // pred_check
      %p83 = pneg %p82
    $region19: #{tpu_custom_call.1} parent=1 // pred_check_branch
      %85 = sbr.rel (%p83) target = $region21
    $region20: #{tpu_custom_call.1} parent=1 // pred_region
      %86 = vst [vmem:[#allocation5] sm:$0xff] 0.0
      %87 = vst [vmem:[#allocation6] sm:$0xff] 0.0
    $region21: #{tpu_custom_call.1} parent=1 // pred_fallthru
      _
    %v88 = vld [vmem:[%s79] sm:$0xff]
    %v89 = vld [vmem:[%s79 + $0x8] sm:$0xff]
    %vm90 = vcmp.ne.s32.totalorder %v88, 0
    %vm91 = vcmp.ne.s32.totalorder %v89, 0
    %v92 = vld [vmem:[%s69] sm:$0xff]
    %v93 = vld [vmem:[%s69 + $0x8] sm:$0xff]
    %v94 = vld [vmem:[#allocation2] sm:$0xff]
    %v95 = vld [vmem:[#allocation2 + $0x8] sm:$0xff]
    %v96 = vsub.f32 %v92, %v94
    %v97 = vsub.f32 %v93, %v95
    %v98 = vand.u32 2147483647, %v96
    %v99 = vand.u32 2147483647, %v97
    %v100 = vsel %vm90, %v98, 0.0
    %v101 = vsel %vm91, %v99, 0.0
    %v102 = vld [vmem:[#allocation5] sm:$0xff]
    %v103 = vadd.f32 %v100, %v101
    %v104 = vadd.f32 %v102, %v103
    %105 = vst [vmem:[#allocation5] sm:$0xff] %v104
    %v106 = vld [vmem:[#allocation6] sm:$0xff]
    %v107 = vsel %vm90, 1, 0
    %v108 = vsel %vm91, 1, 0
    %v109 = vcvt.s32.f32 %v107
    %v110 = vcvt.s32.f32 %v108
    %v111 = vadd.f32 %v109, %v110
    %v112 = vadd.f32 %v106, %v111
    %113 = vst [vmem:[#allocation6] sm:$0xff] %v112
    // Predicated region
    $region22: #{tpu_custom_call.1} parent=1 // pred_check
      _
    $region23: #{tpu_custom_call.1} parent=1 // pred_check_branch
      %115 = sbr.rel (0) target = $region25
    $region24: #{tpu_custom_call.1} parent=1 // pred_region
      %s117 = ssub.s32 128, 128
      %118 = vsyncadd [#allocation4], %s117
      %s120 = sshll.u32 [#allocation5], 4
      %s121 = int_to_ptr.vmem [resolvable:$true] %s120
      %123 = dma.vmem_to_hbm [thread:$0]  %s121, 128, %s3, [#allocation4]
    $region25: #{tpu_custom_call.1} parent=1 // pred_fallthru
      _
    // Predicated region
    $region26: #{tpu_custom_call.1} parent=1 // pred_check
      _
    $region27: #{tpu_custom_call.1} parent=1 // pred_check_branch
      %125 = sbr.rel (0) target = $region29
    $region28: #{tpu_custom_call.1} parent=1 // pred_region
      %s127 = ssub.s32 128, 128
      %128 = vsyncadd [#allocation7], %s127
      %s130 = sshll.u32 [#allocation6], 4
      %s131 = int_to_ptr.vmem [resolvable:$true] %s130
      %133 = dma.vmem_to_hbm [thread:$0]  %s131, 128, %s4, [#allocation7]
    $region29: #{tpu_custom_call.1} parent=1 // pred_fallthru
      _
    // Predicated region
    $region30: #{tpu_custom_call.1} parent=1 // pred_check
      _
    $region31: #{tpu_custom_call.1} parent=1 // pred_check_branch
      %135 = sbr.rel (0) target = $region33
    $region32: #{tpu_custom_call.1} parent=1 // pred_region
      %136 = dma.done [#allocation4], 128
    $region33: #{tpu_custom_call.1} parent=1 // pred_fallthru
      _
    // Predicated region
    $region34: #{tpu_custom_call.1} parent=1 // pred_check
      _
    $region35: #{tpu_custom_call.1} parent=1 // pred_check_branch
      %138 = sbr.rel (0) target = $region37
    $region36: #{tpu_custom_call.1} parent=1 // pred_region
      %139 = dma.done [#allocation7], 128
    $region37: #{tpu_custom_call.1} parent=1 // pred_fallthru
      _
    %140 = vsyncpa [#allocation3], 1
    %141 = vsyncpa [#allocation4], 1
    %142 = vsyncpa [#allocation7], 1

</llo_original>
